<compile_context>
chip_gen: v6e
topology: v6e:2x2x1
jax: 0.10.0
libtpu: 0.0.40
codegen_flags: <defaults>
</compile_context>

<pallas_src>
import jax
import jax.numpy as jnp
from jax import lax
from jax.experimental import pallas as pl
from jax.experimental.pallas import tpu as pltpu  # noqa: F401  (TPU backend import)

EPS = 1e-5


def bn_add_kernel(x_ref, y_ref, gb_ref, o_ref):
    # x_ref, y_ref, o_ref: (N, C, HW) float32 in VMEM
    # gb_ref: (C, 2) float32 in VMEM  -- column 0 = gamma, column 1 = beta
    x = x_ref[...]
    n_red = x.shape[0] * x.shape[2]          # reduction count: N * H * W (static)
    inv_n = 1.0 / n_red

    # Two-pass per-channel batch statistics (biased variance, torch training mode).
    mean = jnp.sum(x, axis=(0, 2), keepdims=True) * inv_n                 # (1, C, 1)
    centered = x - mean
    var = jnp.sum(centered * centered, axis=(0, 2), keepdims=True) * inv_n  # (1, C, 1)

    gb = gb_ref[...]                                                      # (C, 2)
    gamma = gb[:, 0:1].reshape(1, -1, 1)                                  # (1, C, 1)
    beta = gb[:, 1:2].reshape(1, -1, 1)                                   # (1, C, 1)

    # out = y + (x - mean) * (gamma * inv_std) + beta
    scale = gamma * lax.rsqrt(var + EPS)                                  # (1, C, 1)
    o_ref[...] = y_ref[...] + centered * scale + beta


def batchnorm_add(x334, x350, gamma, beta):
    """x334, x350: (N, C, H, W) float32.  Returns (N, C, H, W) float32."""
    N, C, H, W = x334.shape
    HW = H * W

    # Free, layout-preserving reshapes (no transposes).
    x3 = x334.reshape(N, C, HW)
    y3 = x350.reshape(N, C, HW)
    gb = jnp.stack([gamma, beta], axis=1)     # (C, 2) packed affine params

    mat_block = pl.BlockSpec((N, C, HW), lambda: (0, 0, 0))
    gb_block = pl.BlockSpec((C, 2), lambda: (0, 0))

    out3 = pl.pallas_call(
        bn_add_kernel,
        out_shape=jax.ShapeDtypeStruct((N, C, HW), jnp.float32),
        grid=(),
        in_specs=[mat_block, mat_block, gb_block],
        out_specs=mat_block,
    )(x3, y3, gb)

    return out3.reshape(N, C, H, W)


def _reference(x, y, gamma, beta):
    """Pure-JAX reference: training-mode batchnorm (biased var) + residual add."""
    C = x.shape[1]
    mean = jnp.mean(x, axis=(0, 2, 3), keepdims=True)
    var = jnp.mean((x - mean) ** 2, axis=(0, 2, 3), keepdims=True)
    x_hat = (x - mean) * lax.rsqrt(var + EPS)
    return y + x_hat * gamma.reshape(1, C, 1, 1) + beta.reshape(1, C, 1, 1)


if __name__ == "__main__":
    key = jax.random.PRNGKey(0)
    k1, k2, k3, k4, k5, k6 = jax.random.split(key, 6)

    # --- Shapes of the original module: (1, 352, 7, 7) ---
    N, C, H, W = 1, 352, 7, 7
    x334 = jax.random.normal(k1, (N, C, H, W), dtype=jnp.float32)
    x350 = jax.random.normal(k2, (N, C, H, W), dtype=jnp.float32)
    gamma = 1.0 + 0.1 * jax.random.normal(k3, (C,), dtype=jnp.float32)
    beta = 0.1 * jax.random.normal(k4, (C,), dtype=jnp.float32)

    ref = jax.block_until_ready(_reference(x334, x350, gamma, beta))
    out = jax.block_until_ready(batchnorm_add(x334, x350, gamma, beta))
    assert out.shape == (N, C, H, W)
    assert jnp.max(jnp.abs(out - ref)) < 1e-4

    # --- Extra check: N > 1 path (restriction lifted per perf review) ---
    N2, C2, H2, W2 = 2, 8, 4, 4
    xb = jax.random.normal(k5, (N2, C2, H2, W2), dtype=jnp.float32)
    yb = jax.random.normal(k6, (N2, C2, H2, W2), dtype=jnp.float32)
    gb_gamma = jnp.ones((C2,), dtype=jnp.float32)
    gb_beta = jnp.zeros((C2,), dtype=jnp.float32)

    ref_b = jax.block_until_ready(_reference(xb, yb, gb_gamma, gb_beta))
    out_b = jax.block_until_ready(batchnorm_add(xb, yb, gb_gamma, gb_beta))
    assert out_b.shape == (N2, C2, H2, W2)
    assert jnp.max(jnp.abs(out_b - ref_b)) < 1e-4

    print("KERNEL_OK")
</pallas_src>

<mosaic_0001>
module attributes {stable_mosaic.version = 11 : i64} {
  func.func @bn_add_kernel(%arg0: memref<1x352x49xf32, #tpu.memory_space<vmem>>, %arg1: memref<1x352x49xf32, #tpu.memory_space<vmem>>, %arg2: memref<352x2xf32, #tpu.memory_space<vmem>>, %arg3: memref<1x352x49xf32, #tpu.memory_space<vmem>>) attributes {dimension_semantics = [], scalar_prefetch = 0 : i64, scratch_operands = 0 : i64, tpu.core_type = #tpu.core_type<tc>} {
    %c0 = arith.constant 0 : index
    %c0_0 = arith.constant 0 : index
    %c0_1 = arith.constant 0 : index
    %0 = vector.load %arg0[%c0, %c0_0, %c0_1] : memref<1x352x49xf32, #tpu.memory_space<vmem>>, vector<1x352x49xf32>
    %cst = arith.constant dense<0.000000e+00> : vector<352xf32>
    %1 = vector.multi_reduction <add>, %0, %cst [0, 2] : vector<1x352x49xf32> to vector<352xf32>
    %2 = vector.shape_cast %1 : vector<352xf32> to vector<1x352x1xf32>
    %cst_2 = arith.constant 0.0204081628 : f32
    %3 = vector.broadcast %cst_2 : f32 to vector<1x352x1xf32>
    %4 = arith.mulf %2, %3 : vector<1x352x1xf32>
    %5 = vector.broadcast %4 : vector<1x352x1xf32> to vector<1x352x49xf32>
    %6 = arith.subf %0, %5 : vector<1x352x49xf32>
    %7 = arith.mulf %6, %6 : vector<1x352x49xf32>
    %cst_3 = arith.constant dense<0.000000e+00> : vector<352xf32>
    %8 = vector.multi_reduction <add>, %7, %cst_3 [0, 2] : vector<1x352x49xf32> to vector<352xf32>
    %9 = vector.shape_cast %8 : vector<352xf32> to vector<1x352x1xf32>
    %cst_4 = arith.constant 0.0204081628 : f32
    %10 = vector.broadcast %cst_4 : f32 to vector<1x352x1xf32>
    %11 = arith.mulf %9, %10 : vector<1x352x1xf32>
    %c0_5 = arith.constant 0 : index
    %c0_6 = arith.constant 0 : index
    %12 = vector.load %arg2[%c0_5, %c0_6] : memref<352x2xf32, #tpu.memory_space<vmem>>, vector<352x2xf32>
    %13 = vector.extract_strided_slice %12 {offsets = [0, 0], sizes = [352, 1], strides = [1, 1]} : vector<352x2xf32> to vector<352x1xf32>
    %14 = vector.shape_cast %13 : vector<352x1xf32> to vector<1x352x1xf32>
    %15 = vector.extract_strided_slice %12 {offsets = [0, 1], sizes = [352, 1], strides = [1, 1]} : vector<352x2xf32> to vector<352x1xf32>
    %16 = vector.shape_cast %15 : vector<352x1xf32> to vector<1x352x1xf32>
    %cst_7 = arith.constant 9.99999974E-6 : f32
    %17 = vector.broadcast %cst_7 : f32 to vector<1x352x1xf32>
    %18 = arith.addf %11, %17 : vector<1x352x1xf32>
    %19 = math.rsqrt %18 : vector<1x352x1xf32>
    %20 = arith.mulf %14, %19 : vector<1x352x1xf32>
    %c0_8 = arith.constant 0 : index
    %c0_9 = arith.constant 0 : index
    %c0_10 = arith.constant 0 : index
    %21 = vector.load %arg1[%c0_8, %c0_9, %c0_10] : memref<1x352x49xf32, #tpu.memory_space<vmem>>, vector<1x352x49xf32>
    %22 = vector.broadcast %20 : vector<1x352x1xf32> to vector<1x352x49xf32>
    %23 = arith.mulf %6, %22 : vector<1x352x49xf32>
    %24 = arith.addf %21, %23 : vector<1x352x49xf32>
    %25 = vector.broadcast %16 : vector<1x352x1xf32> to vector<1x352x49xf32>
    %26 = arith.addf %24, %25 : vector<1x352x49xf32>
    %c0_11 = arith.constant 0 : index
    %c0_12 = arith.constant 0 : index
    %c0_13 = arith.constant 0 : index
    %27 = vector.load %arg3[%c0_11, %c0_12, %c0_13] : memref<1x352x49xf32, #tpu.memory_space<vmem>>, vector<1x352x49xf32>
    tpu.vector_store %arg3[%c0_11, %c0_12, %c0_13], %26 {strides = array<i32>} : memref<1x352x49xf32, #tpu.memory_space<vmem>>, vector<1x352x49xf32>,
    return
  }
}

</mosaic_0001>

<llo_original>
// kernel: tpu_custom_call.1
$region0: #{tpu_custom_call.1}
  #allocation0 [shape = 'u32[]', space=smem, size = 0x4, offset = 0x4, fixed_abs, tag = 'smem constant byte address 0x4 - core index']
  #allocation1 [shape = 'u32[144,128]{1,0:T(1,128)}', space=vmem, size = 0x12000, scoped, tag = 'internal scratch']
  %s0 = inlined_call_operand.vmem [shape: f32[1,352,49], index: 0, kind: input, shape index: {}]
  %s1 = inlined_call_operand.vmem [shape: f32[1,352,49], index: 1, kind: input, shape index: {}]
  %s2 = inlined_call_operand.vmem [shape: f32[352,2], index: 2, kind: input, shape index: {}]
  %s3 = inlined_call_operand.vmem [shape: f32[1,352,49], index: 3, kind: output, shape index: {}]
  %s4 = sld [smem:[#allocation0]]
  $region22: #{tpu_custom_call.1} parent=0
    _
  %s6 = ssub.s32 1, %s4
  %s7 = scalar_select 0, %s6, %s4
  // Predicated region
  $region2: #{tpu_custom_call.1} parent=0 // pred_check
    _
  $region3: #{tpu_custom_call.1} parent=0 // pred_check_branch
    %9 = sbr.rel (0) target = $region5
  $region4: #{tpu_custom_call.1} parent=0 // pred_region
    _
  $region5: #{tpu_custom_call.1} parent=0 // pred_fallthru
    _
  // Predicated region
  $region6: #{tpu_custom_call.1} parent=0 // pred_check
    _
  $region7: #{tpu_custom_call.1} parent=0 // pred_check_branch
    %11 = sbr.rel (0) target = $region9
  $region8: #{tpu_custom_call.1} parent=0 // pred_region
    _
  $region9: #{tpu_custom_call.1} parent=0 // pred_fallthru
    _
  // Predicated region
  $region10: #{tpu_custom_call.1} parent=0 // pred_check
    _
  $region11: #{tpu_custom_call.1} parent=0 // pred_check_branch
    %13 = sbr.rel (0) target = $region13
  $region12: #{tpu_custom_call.1} parent=0 // pred_region
    _
  $region13: #{tpu_custom_call.1} parent=0 // pred_fallthru
    _
  %v14 = vld [vmem:[%s0] sm:$0xff]
  %v15 = vld [vmem:[%s0 + $0x8] sm:$0xff]
  %v16 = vld [vmem:[%s0 + $0x10] sm:$0xff]
  %v17 = vld [vmem:[%s0 + $0x18] sm:$0xff]
  %v18 = vld [vmem:[%s0 + $0x20] sm:$0xff]
  %v19 = vld [vmem:[%s0 + $0x28] sm:$0xff]
  %v20 = vld [vmem:[%s0 + $0x30] sm:$0xff]
  %v21 = vld [vmem:[%s0 + $0x38] sm:$0xff]
  %v22 = vld [vmem:[%s0 + $0x40] sm:$0xff]
  %v23 = vld [vmem:[%s0 + $0x48] sm:$0xff]
  %v24 = vld [vmem:[%s0 + $0x50] sm:$0xff]
  %v25 = vld [vmem:[%s0 + $0x58] sm:$0xff]
  %v26 = vld [vmem:[%s0 + $0x60] sm:$0xff]
  %v27 = vld [vmem:[%s0 + $0x68] sm:$0xff]
  %v28 = vld [vmem:[%s0 + $0x70] sm:$0xff]
  %v29 = vld [vmem:[%s0 + $0x78] sm:$0xff]
  %v30 = vld [vmem:[%s0 + $0x80] sm:$0xff]
  %v31 = vld [vmem:[%s0 + $0x88] sm:$0xff]
  %v32 = vld [vmem:[%s0 + $0x90] sm:$0xff]
  %v33 = vld [vmem:[%s0 + $0x98] sm:$0xff]
  %v34 = vld [vmem:[%s0 + $0xa0] sm:$0xff]
  %v35 = vld [vmem:[%s0 + $0xa8] sm:$0xff]
  %v36 = vld [vmem:[%s0 + $0xb0] sm:$0xff]
  %v37 = vld [vmem:[%s0 + $0xb8] sm:$0xff]
  %v38 = vld [vmem:[%s0 + $0xc0] sm:$0xff]
  %v39 = vld [vmem:[%s0 + $0xc8] sm:$0xff]
  %v40 = vld [vmem:[%s0 + $0xd0] sm:$0xff]
  %v41 = vld [vmem:[%s0 + $0xd8] sm:$0xff]
  %v42 = vld [vmem:[%s0 + $0xe0] sm:$0xff]
  %v43 = vld [vmem:[%s0 + $0xe8] sm:$0xff]
  %v44 = vld [vmem:[%s0 + $0xf0] sm:$0xff]
  %v45 = vld [vmem:[%s0 + $0xf8] sm:$0xff]
  %v46 = vld [vmem:[%s0 + $0x100] sm:$0xff]
  %v47 = vld [vmem:[%s0 + $0x108] sm:$0xff]
  %v48 = vld [vmem:[%s0 + $0x110] sm:$0xff]
  %v49 = vld [vmem:[%s0 + $0x118] sm:$0xff]
  %v50 = vld [vmem:[%s0 + $0x120] sm:$0xff]
  %v51 = vld [vmem:[%s0 + $0x128] sm:$0xff]
  %v52 = vld [vmem:[%s0 + $0x130] sm:$0xff]
  %v53 = vld [vmem:[%s0 + $0x138] sm:$0xff]
  %v54 = vld [vmem:[%s0 + $0x140] sm:$0xff]
  %v55 = vld [vmem:[%s0 + $0x148] sm:$0xff]
  %v56 = vld [vmem:[%s0 + $0x150] sm:$0xff]
  %v57 = vld [vmem:[%s0 + $0x158] sm:$0xff]
  %vm58 = vcmask 400384
  %v59 = vsel %vm58, %v14, 0.0
  %60 = vadd.xlane.f32.xlu0 %v59
  %v61 = vpop.xlane.xlu0 %60
  %v62 = vsel %vm58, %v15, 0.0
  %63 = vadd.xlane.f32.xlu0 %v62
  %v64 = vpop.xlane.xlu0 %63
  %v65 = vsel %vm58, %v16, 0.0
  %66 = vadd.xlane.f32.xlu0 %v65
  %v67 = vpop.xlane.xlu0 %66
  %v68 = vsel %vm58, %v17, 0.0
  %69 = vadd.xlane.f32.xlu0 %v68
  %v70 = vpop.xlane.xlu0 %69
  %v71 = vsel %vm58, %v18, 0.0
  %72 = vadd.xlane.f32.xlu0 %v71
  %v73 = vpop.xlane.xlu0 %72
  %v74 = vsel %vm58, %v19, 0.0
  %75 = vadd.xlane.f32.xlu0 %v74
  %v76 = vpop.xlane.xlu0 %75
  %v77 = vsel %vm58, %v20, 0.0
  %78 = vadd.xlane.f32.xlu0 %v77
  %v79 = vpop.xlane.xlu0 %78
  %v80 = vsel %vm58, %v21, 0.0
  %81 = vadd.xlane.f32.xlu0 %v80
  %v82 = vpop.xlane.xlu0 %81
  %v83 = vsel %vm58, %v22, 0.0
  %84 = vadd.xlane.f32.xlu0 %v83
  %v85 = vpop.xlane.xlu0 %84
  %v86 = vsel %vm58, %v23, 0.0
  %87 = vadd.xlane.f32.xlu0 %v86
  %v88 = vpop.xlane.xlu0 %87
  %v89 = vsel %vm58, %v24, 0.0
  %90 = vadd.xlane.f32.xlu0 %v89
  %v91 = vpop.xlane.xlu0 %90
  %v92 = vsel %vm58, %v25, 0.0
  %93 = vadd.xlane.f32.xlu0 %v92
  %v94 = vpop.xlane.xlu0 %93
  %v95 = vsel %vm58, %v26, 0.0
  %96 = vadd.xlane.f32.xlu0 %v95
  %v97 = vpop.xlane.xlu0 %96
  %v98 = vsel %vm58, %v27, 0.0
  %99 = vadd.xlane.f32.xlu0 %v98
  %v100 = vpop.xlane.xlu0 %99
  %v101 = vsel %vm58, %v28, 0.0
  %102 = vadd.xlane.f32.xlu0 %v101
  %v103 = vpop.xlane.xlu0 %102
  %v104 = vsel %vm58, %v29, 0.0
  %105 = vadd.xlane.f32.xlu0 %v104
  %v106 = vpop.xlane.xlu0 %105
  %v107 = vsel %vm58, %v30, 0.0
  %108 = vadd.xlane.f32.xlu0 %v107
  %v109 = vpop.xlane.xlu0 %108
  %v110 = vsel %vm58, %v31, 0.0
  %111 = vadd.xlane.f32.xlu0 %v110
  %v112 = vpop.xlane.xlu0 %111
  %v113 = vsel %vm58, %v32, 0.0
  %114 = vadd.xlane.f32.xlu0 %v113
  %v115 = vpop.xlane.xlu0 %114
  %v116 = vsel %vm58, %v33, 0.0
  %117 = vadd.xlane.f32.xlu0 %v116
  %v118 = vpop.xlane.xlu0 %117
  %v119 = vsel %vm58, %v34, 0.0
  %120 = vadd.xlane.f32.xlu0 %v119
  %v121 = vpop.xlane.xlu0 %120
  %v122 = vsel %vm58, %v35, 0.0
  %123 = vadd.xlane.f32.xlu0 %v122
  %v124 = vpop.xlane.xlu0 %123
  %v125 = vsel %vm58, %v36, 0.0
  %126 = vadd.xlane.f32.xlu0 %v125
  %v127 = vpop.xlane.xlu0 %126
  %v128 = vsel %vm58, %v37, 0.0
  %129 = vadd.xlane.f32.xlu0 %v128
  %v130 = vpop.xlane.xlu0 %129
  %v131 = vsel %vm58, %v38, 0.0
  %132 = vadd.xlane.f32.xlu0 %v131
  %v133 = vpop.xlane.xlu0 %132
  %v134 = vsel %vm58, %v39, 0.0
  %135 = vadd.xlane.f32.xlu0 %v134
  %v136 = vpop.xlane.xlu0 %135
  %v137 = vsel %vm58, %v40, 0.0
  %138 = vadd.xlane.f32.xlu0 %v137
  %v139 = vpop.xlane.xlu0 %138
  %v140 = vsel %vm58, %v41, 0.0
  %141 = vadd.xlane.f32.xlu0 %v140
  %v142 = vpop.xlane.xlu0 %141
  %v143 = vsel %vm58, %v42, 0.0
  %144 = vadd.xlane.f32.xlu0 %v143
  %v145 = vpop.xlane.xlu0 %144
  %v146 = vsel %vm58, %v43, 0.0
  %147 = vadd.xlane.f32.xlu0 %v146
  %v148 = vpop.xlane.xlu0 %147
  %v149 = vsel %vm58, %v44, 0.0
  %150 = vadd.xlane.f32.xlu0 %v149
  %v151 = vpop.xlane.xlu0 %150
  %v152 = vsel %vm58, %v45, 0.0
  %153 = vadd.xlane.f32.xlu0 %v152
  %v154 = vpop.xlane.xlu0 %153
  %v155 = vsel %vm58, %v46, 0.0
  %156 = vadd.xlane.f32.xlu0 %v155
  %v157 = vpop.xlane.xlu0 %156
  %v158 = vsel %vm58, %v47, 0.0
  %159 = vadd.xlane.f32.xlu0 %v158
  %v160 = vpop.xlane.xlu0 %159
  %v161 = vsel %vm58, %v48, 0.0
  %162 = vadd.xlane.f32.xlu0 %v161
  %v163 = vpop.xlane.xlu0 %162
  %v164 = vsel %vm58, %v49, 0.0
  %165 = vadd.xlane.f32.xlu0 %v164
  %v166 = vpop.xlane.xlu0 %165
  %v167 = vsel %vm58, %v50, 0.0
  %168 = vadd.xlane.f32.xlu0 %v167
  %v169 = vpop.xlane.xlu0 %168
  %v170 = vsel %vm58, %v51, 0.0
  %171 = vadd.xlane.f32.xlu0 %v170
  %v172 = vpop.xlane.xlu0 %171
  %v173 = vsel %vm58, %v52, 0.0
  %174 = vadd.xlane.f32.xlu0 %v173
  %v175 = vpop.xlane.xlu0 %174
  %v176 = vsel %vm58, %v53, 0.0
  %177 = vadd.xlane.f32.xlu0 %v176
  %v178 = vpop.xlane.xlu0 %177
  %v179 = vsel %vm58, %v54, 0.0
  %180 = vadd.xlane.f32.xlu0 %v179
  %v181 = vpop.xlane.xlu0 %180
  %v182 = vsel %vm58, %v55, 0.0
  %183 = vadd.xlane.f32.xlu0 %v182
  %v184 = vpop.xlane.xlu0 %183
  %v185 = vsel %vm58, %v56, 0.0
  %186 = vadd.xlane.f32.xlu0 %v185
  %v187 = vpop.xlane.xlu0 %186
  %v188 = vsel %vm58, %v57, 0.0
  %189 = vadd.xlane.f32.xlu0 %v188
  %v190 = vpop.xlane.xlu0 %189
  %v191 = vmul.f32 %v61, 0.020408163
  %v192 = vmul.f32 %v64, 0.020408163
  %v193 = vmul.f32 %v67, 0.020408163
  %v194 = vmul.f32 %v70, 0.020408163
  %v195 = vmul.f32 %v73, 0.020408163
  %v196 = vmul.f32 %v76, 0.020408163
  %v197 = vmul.f32 %v79, 0.020408163
  %v198 = vmul.f32 %v82, 0.020408163
  %v199 = vmul.f32 %v85, 0.020408163
  %v200 = vmul.f32 %v88, 0.020408163
  %v201 = vmul.f32 %v91, 0.020408163
  %v202 = vmul.f32 %v94, 0.020408163
  %v203 = vmul.f32 %v97, 0.020408163
  %v204 = vmul.f32 %v100, 0.020408163
  %v205 = vmul.f32 %v103, 0.020408163
  %v206 = vmul.f32 %v106, 0.020408163
  %v207 = vmul.f32 %v109, 0.020408163
  %v208 = vmul.f32 %v112, 0.020408163
  %v209 = vmul.f32 %v115, 0.020408163
  %v210 = vmul.f32 %v118, 0.020408163
  %v211 = vmul.f32 %v121, 0.020408163
  %v212 = vmul.f32 %v124, 0.020408163
  %v213 = vmul.f32 %v127, 0.020408163
  %v214 = vmul.f32 %v130, 0.020408163
  %v215 = vmul.f32 %v133, 0.020408163
  %v216 = vmul.f32 %v136, 0.020408163
  %v217 = vmul.f32 %v139, 0.020408163
  %v218 = vmul.f32 %v142, 0.020408163
  %v219 = vmul.f32 %v145, 0.020408163
  %v220 = vmul.f32 %v148, 0.020408163
  %v221 = vmul.f32 %v151, 0.020408163
  %v222 = vmul.f32 %v154, 0.020408163
  %v223 = vmul.f32 %v157, 0.020408163
  %v224 = vmul.f32 %v160, 0.020408163
  %v225 = vmul.f32 %v163, 0.020408163
  %v226 = vmul.f32 %v166, 0.020408163
  %v227 = vmul.f32 %v169, 0.020408163
  %v228 = vmul.f32 %v172, 0.020408163
  %v229 = vmul.f32 %v175, 0.020408163
  %v230 = vmul.f32 %v178, 0.020408163
  %v231 = vmul.f32 %v181, 0.020408163
  %v232 = vmul.f32 %v184, 0.020408163
  %v233 = vmul.f32 %v187, 0.020408163
  %v234 = vmul.f32 %v190, 0.020408163
  %v235 = vsub.f32 %v14, %v191
  %v236 = vsub.f32 %v15, %v192
  %v237 = vsub.f32 %v16, %v193
  %v238 = vsub.f32 %v17, %v194
  %v239 = vsub.f32 %v18, %v195
  %v240 = vsub.f32 %v19, %v196
  %v241 = vsub.f32 %v20, %v197
  %v242 = vsub.f32 %v21, %v198
  %v243 = vsub.f32 %v22, %v199
  %v244 = vsub.f32 %v23, %v200
  %v245 = vsub.f32 %v24, %v201
  %v246 = vsub.f32 %v25, %v202
  %v247 = vsub.f32 %v26, %v203
  %v248 = vsub.f32 %v27, %v204
  %v249 = vsub.f32 %v28, %v205
  %v250 = vsub.f32 %v29, %v206
  %v251 = vsub.f32 %v30, %v207
  %v252 = vsub.f32 %v31, %v208
  %v253 = vsub.f32 %v32, %v209
  %v254 = vsub.f32 %v33, %v210
  %v255 = vsub.f32 %v34, %v211
  %v256 = vsub.f32 %v35, %v212
  %v257 = vsub.f32 %v36, %v213
  %v258 = vsub.f32 %v37, %v214
  %v259 = vsub.f32 %v38, %v215
  %v260 = vsub.f32 %v39, %v216
  %v261 = vsub.f32 %v40, %v217
  %v262 = vsub.f32 %v41, %v218
  %v263 = vsub.f32 %v42, %v219
  %v264 = vsub.f32 %v43, %v220
  %v265 = vsub.f32 %v44, %v221
  %v266 = vsub.f32 %v45, %v222
  %v267 = vsub.f32 %v46, %v223
  %v268 = vsub.f32 %v47, %v224
  %v269 = vsub.f32 %v48, %v225
  %v270 = vsub.f32 %v49, %v226
  %v271 = vsub.f32 %v50, %v227
  %v272 = vsub.f32 %v51, %v228
  %v273 = vsub.f32 %v52, %v229
  %v274 = vsub.f32 %v53, %v230
  %v275 = vsub.f32 %v54, %v231
  %v276 = vsub.f32 %v55, %v232
  %v277 = vsub.f32 %v56, %v233
  %v278 = vsub.f32 %v57, %v234
  %v279 = vmul.f32 %v235, %v235
  %v280 = vmul.f32 %v236, %v236
  %v281 = vmul.f32 %v237, %v237
  %v282 = vmul.f32 %v238, %v238
  %v283 = vmul.f32 %v239, %v239
  %v284 = vmul.f32 %v240, %v240
  %v285 = vmul.f32 %v241, %v241
  %v286 = vmul.f32 %v242, %v242
  %v287 = vmul.f32 %v243, %v243
  %v288 = vmul.f32 %v244, %v244
  %v289 = vmul.f32 %v245, %v245
  %v290 = vmul.f32 %v246, %v246
  %v291 = vmul.f32 %v247, %v247
  %v292 = vmul.f32 %v248, %v248
  %v293 = vmul.f32 %v249, %v249
  %v294 = vmul.f32 %v250, %v250
  %v295 = vmul.f32 %v251, %v251
  %v296 = vmul.f32 %v252, %v252
  %v297 = vmul.f32 %v253, %v253
  %v298 = vmul.f32 %v254, %v254
  %v299 = vmul.f32 %v255, %v255
  %v300 = vmul.f32 %v256, %v256
  %v301 = vmul.f32 %v257, %v257
  %v302 = vmul.f32 %v258, %v258
  %v303 = vmul.f32 %v259, %v259
  %v304 = vmul.f32 %v260, %v260
  %v305 = vmul.f32 %v261, %v261
  %v306 = vmul.f32 %v262, %v262
  %v307 = vmul.f32 %v263, %v263
  %v308 = vmul.f32 %v264, %v264
  %v309 = vmul.f32 %v265, %v265
  %v310 = vmul.f32 %v266, %v266
  %v311 = vmul.f32 %v267, %v267
  %v312 = vmul.f32 %v268, %v268
  %v313 = vmul.f32 %v269, %v269
  %v314 = vmul.f32 %v270, %v270
  %v315 = vmul.f32 %v271, %v271
  %v316 = vmul.f32 %v272, %v272
  %v317 = vmul.f32 %v273, %v273
  %v318 = vmul.f32 %v274, %v274
  %v319 = vmul.f32 %v275, %v275
  %v320 = vmul.f32 %v276, %v276
  %v321 = vmul.f32 %v277, %v277
  %v322 = vmul.f32 %v278, %v278
  %v323 = vsel %vm58, %v279, 0.0
  %324 = vadd.xlane.f32.xlu0 %v323
  %v325 = vpop.xlane.xlu0 %324
  %v326 = vsel %vm58, %v280, 0.0
  %327 = vadd.xlane.f32.xlu0 %v326
  %v328 = vpop.xlane.xlu0 %327
  %v329 = vsel %vm58, %v281, 0.0
  %330 = vadd.xlane.f32.xlu0 %v329
  %v331 = vpop.xlane.xlu0 %330
  %v332 = vsel %vm58, %v282, 0.0
  %333 = vadd.xlane.f32.xlu0 %v332
  %v334 = vpop.xlane.xlu0 %333
  %v335 = vsel %vm58, %v283, 0.0
  %336 = vadd.xlane.f32.xlu0 %v335
  %v337 = vpop.xlane.xlu0 %336
  %v338 = vsel %vm58, %v284, 0.0
  %339 = vadd.xlane.f32.xlu0 %v338
  %v340 = vpop.xlane.xlu0 %339
  %v341 = vsel %vm58, %v285, 0.0
  %342 = vadd.xlane.f32.xlu0 %v341
  %v343 = vpop.xlane.xlu0 %342
  %v344 = vsel %vm58, %v286, 0.0
  %345 = vadd.xlane.f32.xlu0 %v344
  %v346 = vpop.xlane.xlu0 %345
  %v347 = vsel %vm58, %v287, 0.0
  %348 = vadd.xlane.f32.xlu0 %v347
  %v349 = vpop.xlane.xlu0 %348
  %v350 = vsel %vm58, %v288, 0.0
  %351 = vadd.xlane.f32.xlu0 %v350
  %v352 = vpop.xlane.xlu0 %351
  %v353 = vsel %vm58, %v289, 0.0
  %354 = vadd.xlane.f32.xlu0 %v353
  %v355 = vpop.xlane.xlu0 %354
  %v356 = vsel %vm58, %v290, 0.0
  %357 = vadd.xlane.f32.xlu0 %v356
  %v358 = vpop.xlane.xlu0 %357
  %v359 = vsel %vm58, %v291, 0.0
  %360 = vadd.xlane.f32.xlu0 %v359
  %v361 = vpop.xlane.xlu0 %360
  %v362 = vsel %vm58, %v292, 0.0
  %363 = vadd.xlane.f32.xlu0 %v362
  %v364 = vpop.xlane.xlu0 %363
  %v365 = vsel %vm58, %v293, 0.0
  %366 = vadd.xlane.f32.xlu0 %v365
  %v367 = vpop.xlane.xlu0 %366
  %v368 = vsel %vm58, %v294, 0.0
  %369 = vadd.xlane.f32.xlu0 %v368
  %v370 = vpop.xlane.xlu0 %369
  %v371 = vsel %vm58, %v295, 0.0
  %372 = vadd.xlane.f32.xlu0 %v371
  %v373 = vpop.xlane.xlu0 %372
  %v374 = vsel %vm58, %v296, 0.0
  %375 = vadd.xlane.f32.xlu0 %v374
  %v376 = vpop.xlane.xlu0 %375
  %v377 = vsel %vm58, %v297, 0.0
  %378 = vadd.xlane.f32.xlu0 %v377
  %v379 = vpop.xlane.xlu0 %378
  %v380 = vsel %vm58, %v298, 0.0
  %381 = vadd.xlane.f32.xlu0 %v380
  %v382 = vpop.xlane.xlu0 %381
  %v383 = vsel %vm58, %v299, 0.0
  %384 = vadd.xlane.f32.xlu0 %v383
  %v385 = vpop.xlane.xlu0 %384
  %v386 = vsel %vm58, %v300, 0.0
  %387 = vadd.xlane.f32.xlu0 %v386
  %v388 = vpop.xlane.xlu0 %387
  %v389 = vsel %vm58, %v301, 0.0
  %390 = vadd.xlane.f32.xlu0 %v389
  %v391 = vpop.xlane.xlu0 %390
  %v392 = vsel %vm58, %v302, 0.0
  %393 = vadd.xlane.f32.xlu0 %v392
  %v394 = vpop.xlane.xlu0 %393
  %v395 = vsel %vm58, %v303, 0.0
  %396 = vadd.xlane.f32.xlu0 %v395
  %v397 = vpop.xlane.xlu0 %396
  %v398 = vsel %vm58, %v304, 0.0
  %399 = vadd.xlane.f32.xlu0 %v398
  %v400 = vpop.xlane.xlu0 %399
  %v401 = vsel %vm58, %v305, 0.0
  %402 = vadd.xlane.f32.xlu0 %v401
  %v403 = vpop.xlane.xlu0 %402
  %v404 = vsel %vm58, %v306, 0.0
  %405 = vadd.xlane.f32.xlu0 %v404
  %v406 = vpop.xlane.xlu0 %405
  %v407 = vsel %vm58, %v307, 0.0
  %408 = vadd.xlane.f32.xlu0 %v407
  %v409 = vpop.xlane.xlu0 %408
  %v410 = vsel %vm58, %v308, 0.0
  %411 = vadd.xlane.f32.xlu0 %v410
  %v412 = vpop.xlane.xlu0 %411
  %v413 = vsel %vm58, %v309, 0.0
  %414 = vadd.xlane.f32.xlu0 %v413
  %v415 = vpop.xlane.xlu0 %414
  %v416 = vsel %vm58, %v310, 0.0
  %417 = vadd.xlane.f32.xlu0 %v416
  %v418 = vpop.xlane.xlu0 %417
  %v419 = vsel %vm58, %v311, 0.0
  %420 = vadd.xlane.f32.xlu0 %v419
  %v421 = vpop.xlane.xlu0 %420
  %v422 = vsel %vm58, %v312, 0.0
  %423 = vadd.xlane.f32.xlu0 %v422
  %v424 = vpop.xlane.xlu0 %423
  %v425 = vsel %vm58, %v313, 0.0
  %426 = vadd.xlane.f32.xlu0 %v425
  %v427 = vpop.xlane.xlu0 %426
  %v428 = vsel %vm58, %v314, 0.0
  %429 = vadd.xlane.f32.xlu0 %v428
  %v430 = vpop.xlane.xlu0 %429
  %v431 = vsel %vm58, %v315, 0.0
  %432 = vadd.xlane.f32.xlu0 %v431
  %v433 = vpop.xlane.xlu0 %432
  %v434 = vsel %vm58, %v316, 0.0
  %435 = vadd.xlane.f32.xlu0 %v434
  %v436 = vpop.xlane.xlu0 %435
  %v437 = vsel %vm58, %v317, 0.0
  %438 = vadd.xlane.f32.xlu0 %v437
  %v439 = vpop.xlane.xlu0 %438
  %v440 = vsel %vm58, %v318, 0.0
  %441 = vadd.xlane.f32.xlu0 %v440
  %v442 = vpop.xlane.xlu0 %441
  %v443 = vsel %vm58, %v319, 0.0
  %444 = vadd.xlane.f32.xlu0 %v443
  %v445 = vpop.xlane.xlu0 %444
  %v446 = vsel %vm58, %v320, 0.0
  %447 = vadd.xlane.f32.xlu0 %v446
  %v448 = vpop.xlane.xlu0 %447
  %v449 = vsel %vm58, %v321, 0.0
  %450 = vadd.xlane.f32.xlu0 %v449
  %v451 = vpop.xlane.xlu0 %450
  %v452 = vsel %vm58, %v322, 0.0
  %453 = vadd.xlane.f32.xlu0 %v452
  %v454 = vpop.xlane.xlu0 %453
  %v455 = vmul.f32 %v325, 0.020408163
  %v456 = vmul.f32 %v328, 0.020408163
  %v457 = vmul.f32 %v331, 0.020408163
  %v458 = vmul.f32 %v334, 0.020408163
  %v459 = vmul.f32 %v337, 0.020408163
  %v460 = vmul.f32 %v340, 0.020408163
  %v461 = vmul.f32 %v343, 0.020408163
  %v462 = vmul.f32 %v346, 0.020408163
  %v463 = vmul.f32 %v349, 0.020408163
  %v464 = vmul.f32 %v352, 0.020408163
  %v465 = vmul.f32 %v355, 0.020408163
  %v466 = vmul.f32 %v358, 0.020408163
  %v467 = vmul.f32 %v361, 0.020408163
  %v468 = vmul.f32 %v364, 0.020408163
  %v469 = vmul.f32 %v367, 0.020408163
  %v470 = vmul.f32 %v370, 0.020408163
  %v471 = vmul.f32 %v373, 0.020408163
  %v472 = vmul.f32 %v376, 0.020408163
  %v473 = vmul.f32 %v379, 0.020408163
  %v474 = vmul.f32 %v382, 0.020408163
  %v475 = vmul.f32 %v385, 0.020408163
  %v476 = vmul.f32 %v388, 0.020408163
  %v477 = vmul.f32 %v391, 0.020408163
  %v478 = vmul.f32 %v394, 0.020408163
  %v479 = vmul.f32 %v397, 0.020408163
  %v480 = vmul.f32 %v400, 0.020408163
  %v481 = vmul.f32 %v403, 0.020408163
  %v482 = vmul.f32 %v406, 0.020408163
  %v483 = vmul.f32 %v409, 0.020408163
  %v484 = vmul.f32 %v412, 0.020408163
  %v485 = vmul.f32 %v415, 0.020408163
  %v486 = vmul.f32 %v418, 0.020408163
  %v487 = vmul.f32 %v421, 0.020408163
  %v488 = vmul.f32 %v424, 0.020408163
  %v489 = vmul.f32 %v427, 0.020408163
  %v490 = vmul.f32 %v430, 0.020408163
  %v491 = vmul.f32 %v433, 0.020408163
  %v492 = vmul.f32 %v436, 0.020408163
  %v493 = vmul.f32 %v439, 0.020408163
  %v494 = vmul.f32 %v442, 0.020408163
  %v495 = vmul.f32 %v445, 0.020408163
  %v496 = vmul.f32 %v448, 0.020408163
  %v497 = vmul.f32 %v451, 0.020408163
  %v498 = vmul.f32 %v454, 0.020408163
  %v499 = vld [vmem:[%s2] sm:$0xff]
  %v500 = vld [vmem:[%s2 + $0x8] sm:$0xff]
  %v501 = vld [vmem:[%s2 + $0x10] sm:$0xff]
  %v502 = vld [vmem:[%s2 + $0x18] sm:$0xff]
  %v503 = vld [vmem:[%s2 + $0x20] sm:$0xff]
  %v504 = vld [vmem:[%s2 + $0x28] sm:$0xff]
  %v505 = vld [vmem:[%s2 + $0x30] sm:$0xff]
  %v506 = vld [vmem:[%s2 + $0x38] sm:$0xff]
  %v507 = vld [vmem:[%s2 + $0x40] sm:$0xff]
  %v508 = vld [vmem:[%s2 + $0x48] sm:$0xff]
  %v509 = vld [vmem:[%s2 + $0x50] sm:$0xff]
  %v510 = vld [vmem:[%s2 + $0x58] sm:$0xff]
  %v511 = vld [vmem:[%s2 + $0x60] sm:$0xff]
  %v512 = vld [vmem:[%s2 + $0x68] sm:$0xff]
  %v513 = vld [vmem:[%s2 + $0x70] sm:$0xff]
  %v514 = vld [vmem:[%s2 + $0x78] sm:$0xff]
  %v515 = vld [vmem:[%s2 + $0x80] sm:$0xff]
  %v516 = vld [vmem:[%s2 + $0x88] sm:$0xff]
  %v517 = vld [vmem:[%s2 + $0x90] sm:$0xff]
  %v518 = vld [vmem:[%s2 + $0x98] sm:$0xff]
  %v519 = vld [vmem:[%s2 + $0xa0] sm:$0xff]
  %v520 = vld [vmem:[%s2 + $0xa8] sm:$0xff]
  %v521 = vld [vmem:[%s2 + $0xb0] sm:$0xff]
  %v522 = vld [vmem:[%s2 + $0xb8] sm:$0xff]
  %v523 = vld [vmem:[%s2 + $0xc0] sm:$0xff]
  %v524 = vld [vmem:[%s2 + $0xc8] sm:$0xff]
  %v525 = vld [vmem:[%s2 + $0xd0] sm:$0xff]
  %v526 = vld [vmem:[%s2 + $0xd8] sm:$0xff]
  %v527 = vld [vmem:[%s2 + $0xe0] sm:$0xff]
  %v528 = vld [vmem:[%s2 + $0xe8] sm:$0xff]
  %v529 = vld [vmem:[%s2 + $0xf0] sm:$0xff]
  %v530 = vld [vmem:[%s2 + $0xf8] sm:$0xff]
  %v531 = vld [vmem:[%s2 + $0x100] sm:$0xff]
  %v532 = vld [vmem:[%s2 + $0x108] sm:$0xff]
  %v533 = vld [vmem:[%s2 + $0x110] sm:$0xff]
  %v534 = vld [vmem:[%s2 + $0x118] sm:$0xff]
  %v535 = vld [vmem:[%s2 + $0x120] sm:$0xff]
  %v536 = vld [vmem:[%s2 + $0x128] sm:$0xff]
  %v537 = vld [vmem:[%s2 + $0x130] sm:$0xff]
  %v538 = vld [vmem:[%s2 + $0x138] sm:$0xff]
  %v539 = vld [vmem:[%s2 + $0x140] sm:$0xff]
  %v540 = vld [vmem:[%s2 + $0x148] sm:$0xff]
  %v541 = vld [vmem:[%s2 + $0x150] sm:$0xff]
  %v542 = vld [vmem:[%s2 + $0x158] sm:$0xff]
  %v543 = vadd.f32 %v455, 1e-05
  %v544 = vadd.f32 %v456, 1e-05
  %v545 = vadd.f32 %v457, 1e-05
  %v546 = vadd.f32 %v458, 1e-05
  %v547 = vadd.f32 %v459, 1e-05
  %v548 = vadd.f32 %v460, 1e-05
  %v549 = vadd.f32 %v461, 1e-05
  %v550 = vadd.f32 %v462, 1e-05
  %v551 = vadd.f32 %v463, 1e-05
  %v552 = vadd.f32 %v464, 1e-05
  %v553 = vadd.f32 %v465, 1e-05
  %v554 = vadd.f32 %v466, 1e-05
  %v555 = vadd.f32 %v467, 1e-05
  %v556 = vadd.f32 %v468, 1e-05
  %v557 = vadd.f32 %v469, 1e-05
  %v558 = vadd.f32 %v470, 1e-05
  %v559 = vadd.f32 %v471, 1e-05
  %v560 = vadd.f32 %v472, 1e-05
  %v561 = vadd.f32 %v473, 1e-05
  %v562 = vadd.f32 %v474, 1e-05
  %v563 = vadd.f32 %v475, 1e-05
  %v564 = vadd.f32 %v476, 1e-05
  %v565 = vadd.f32 %v477, 1e-05
  %v566 = vadd.f32 %v478, 1e-05
  %v567 = vadd.f32 %v479, 1e-05
  %v568 = vadd.f32 %v480, 1e-05
  %v569 = vadd.f32 %v481, 1e-05
  %v570 = vadd.f32 %v482, 1e-05
  %v571 = vadd.f32 %v483, 1e-05
  %v572 = vadd.f32 %v484, 1e-05
  %v573 = vadd.f32 %v485, 1e-05
  %v574 = vadd.f32 %v486, 1e-05
  %v575 = vadd.f32 %v487, 1e-05
  %v576 = vadd.f32 %v488, 1e-05
  %v577 = vadd.f32 %v489, 1e-05
  %v578 = vadd.f32 %v490, 1e-05
  %v579 = vadd.f32 %v491, 1e-05
  %v580 = vadd.f32 %v492, 1e-05
  %v581 = vadd.f32 %v493, 1e-05
  %v582 = vadd.f32 %v494, 1e-05
  %v583 = vadd.f32 %v495, 1e-05
  %v584 = vadd.f32 %v496, 1e-05
  %v585 = vadd.f32 %v497, 1e-05
  %v586 = vadd.f32 %v498, 1e-05
  %v587 = vrsqrt.pop %v543
  %v588 = vrsqrt.pop %v544
  %v589 = vrsqrt.pop %v545
  %v590 = vrsqrt.pop %v546
  %v591 = vrsqrt.pop %v547
  %v592 = vrsqrt.pop %v548
  %v593 = vrsqrt.pop %v549
  %v594 = vrsqrt.pop %v550
  %v595 = vrsqrt.pop %v551
  %v596 = vrsqrt.pop %v552
  %v597 = vrsqrt.pop %v553
  %v598 = vrsqrt.pop %v554
  %v599 = vrsqrt.pop %v555
  %v600 = vrsqrt.pop %v556
  %v601 = vrsqrt.pop %v557
  %v602 = vrsqrt.pop %v558
  %v603 = vrsqrt.pop %v559
  %v604 = vrsqrt.pop %v560
  %v605 = vrsqrt.pop %v561
  %v606 = vrsqrt.pop %v562
  %v607 = vrsqrt.pop %v563
  %v608 = vrsqrt.pop %v564
  %v609 = vrsqrt.pop %v565
  %v610 = vrsqrt.pop %v566
  %v611 = vrsqrt.pop %v567
  %v612 = vrsqrt.pop %v568
  %v613 = vrsqrt.pop %v569
  %v614 = vrsqrt.pop %v570
  %v615 = vrsqrt.pop %v571
  %v616 = vrsqrt.pop %v572
  %v617 = vrsqrt.pop %v573
  %v618 = vrsqrt.pop %v574
  %v619 = vrsqrt.pop %v575
  %v620 = vrsqrt.pop %v576
  %v621 = vrsqrt.pop %v577
  %v622 = vrsqrt.pop %v578
  %v623 = vrsqrt.pop %v579
  %v624 = vrsqrt.pop %v580
  %v625 = vrsqrt.pop %v581
  %v626 = vrsqrt.pop %v582
  %v627 = vrsqrt.pop %v583
  %v628 = vrsqrt.pop %v584
  %v629 = vrsqrt.pop %v585
  %v630 = vrsqrt.pop %v586
  %v631 = vmul.f32 %v499, %v587
  %v632 = vmul.f32 %v500, %v588
  %v633 = vmul.f32 %v501, %v589
  %v634 = vmul.f32 %v502, %v590
  %v635 = vmul.f32 %v503, %v591
  %v636 = vmul.f32 %v504, %v592
  %v637 = vmul.f32 %v505, %v593
  %v638 = vmul.f32 %v506, %v594
  %v639 = vmul.f32 %v507, %v595
  %v640 = vmul.f32 %v508, %v596
  %v641 = vmul.f32 %v509, %v597
  %v642 = vmul.f32 %v510, %v598
  %v643 = vmul.f32 %v511, %v599
  %v644 = vmul.f32 %v512, %v600
  %v645 = vmul.f32 %v513, %v601
  %v646 = vmul.f32 %v514, %v602
  %v647 = vmul.f32 %v515, %v603
  %v648 = vmul.f32 %v516, %v604
  %v649 = vmul.f32 %v517, %v605
  %v650 = vmul.f32 %v518, %v606
  %v651 = vmul.f32 %v519, %v607
  %v652 = vmul.f32 %v520, %v608
  %v653 = vmul.f32 %v521, %v609
  %v654 = vmul.f32 %v522, %v610
  %v655 = vmul.f32 %v523, %v611
  %v656 = vmul.f32 %v524, %v612
  %v657 = vmul.f32 %v525, %v613
  %v658 = vmul.f32 %v526, %v614
  %v659 = vmul.f32 %v527, %v615
  %v660 = vmul.f32 %v528, %v616
  %v661 = vmul.f32 %v529, %v617
  %v662 = vmul.f32 %v530, %v618
  %v663 = vmul.f32 %v531, %v619
  %v664 = vmul.f32 %v532, %v620
  %v665 = vmul.f32 %v533, %v621
  %v666 = vmul.f32 %v534, %v622
  %v667 = vmul.f32 %v535, %v623
  %v668 = vmul.f32 %v536, %v624
  %v669 = vmul.f32 %v537, %v625
  %v670 = vmul.f32 %v538, %v626
  %v671 = vmul.f32 %v539, %v627
  %v672 = vmul.f32 %v540, %v628
  %v673 = vmul.f32 %v541, %v629
  %v674 = vmul.f32 %v542, %v630
  %v675 = vld [vmem:[%s1] sm:$0xff]
  %v676 = vld [vmem:[%s1 + $0x8] sm:$0xff]
  %v677 = vld [vmem:[%s1 + $0x10] sm:$0xff]
  %v678 = vld [vmem:[%s1 + $0x18] sm:$0xff]
  %v679 = vld [vmem:[%s1 + $0x20] sm:$0xff]
  %v680 = vld [vmem:[%s1 + $0x28] sm:$0xff]
  %v681 = vld [vmem:[%s1 + $0x30] sm:$0xff]
  %v682 = vld [vmem:[%s1 + $0x38] sm:$0xff]
  %v683 = vld [vmem:[%s1 + $0x40] sm:$0xff]
  %v684 = vld [vmem:[%s1 + $0x48] sm:$0xff]
  %v685 = vld [vmem:[%s1 + $0x50] sm:$0xff]
  %v686 = vld [vmem:[%s1 + $0x58] sm:$0xff]
  %v687 = vld [vmem:[%s1 + $0x60] sm:$0xff]
  %v688 = vld [vmem:[%s1 + $0x68] sm:$0xff]
  %v689 = vld [vmem:[%s1 + $0x70] sm:$0xff]
  %v690 = vld [vmem:[%s1 + $0x78] sm:$0xff]
  %v691 = vld [vmem:[%s1 + $0x80] sm:$0xff]
  %v692 = vld [vmem:[%s1 + $0x88] sm:$0xff]
  %v693 = vld [vmem:[%s1 + $0x90] sm:$0xff]
  %v694 = vld [vmem:[%s1 + $0x98] sm:$0xff]
  %v695 = vld [vmem:[%s1 + $0xa0] sm:$0xff]
  %v696 = vld [vmem:[%s1 + $0xa8] sm:$0xff]
  %v697 = vld [vmem:[%s1 + $0xb0] sm:$0xff]
  %v698 = vld [vmem:[%s1 + $0xb8] sm:$0xff]
  %v699 = vld [vmem:[%s1 + $0xc0] sm:$0xff]
  %v700 = vld [vmem:[%s1 + $0xc8] sm:$0xff]
  %v701 = vld [vmem:[%s1 + $0xd0] sm:$0xff]
  %v702 = vld [vmem:[%s1 + $0xd8] sm:$0xff]
  %v703 = vld [vmem:[%s1 + $0xe0] sm:$0xff]
  %v704 = vld [vmem:[%s1 + $0xe8] sm:$0xff]
  %v705 = vld [vmem:[%s1 + $0xf0] sm:$0xff]
  %v706 = vld [vmem:[%s1 + $0xf8] sm:$0xff]
  %v707 = vld [vmem:[%s1 + $0x100] sm:$0xff]
  %v708 = vld [vmem:[%s1 + $0x108] sm:$0xff]
  %v709 = vld [vmem:[%s1 + $0x110] sm:$0xff]
  %v710 = vld [vmem:[%s1 + $0x118] sm:$0xff]
  %v711 = vld [vmem:[%s1 + $0x120] sm:$0xff]
  %v712 = vld [vmem:[%s1 + $0x128] sm:$0xff]
  %v713 = vld [vmem:[%s1 + $0x130] sm:$0xff]
  %v714 = vld [vmem:[%s1 + $0x138] sm:$0xff]
  %v715 = vld [vmem:[%s1 + $0x140] sm:$0xff]
  %v716 = vld [vmem:[%s1 + $0x148] sm:$0xff]
  %v717 = vld [vmem:[%s1 + $0x150] sm:$0xff]
  %v718 = vld [vmem:[%s1 + $0x158] sm:$0xff]
  %720 = vset.pattern.permute.xlu0 0
  %721 = vperm.xlu0 %720, %v631
  %v722 = vpop.permute.xlu0 %721
  %725 = vset.pattern.permute.xlu0 0
  %726 = vperm.xlu0 %725, %v632
  %v727 = vpop.permute.xlu0 %726
  %730 = vset.pattern.permute.xlu0 0
  %731 = vperm.xlu0 %730, %v633
  %v732 = vpop.permute.xlu0 %731
  %735 = vset.pattern.permute.xlu0 0
  %736 = vperm.xlu0 %735, %v634
  %v737 = vpop.permute.xlu0 %736
  %740 = vset.pattern.permute.xlu0 0
  %741 = vperm.xlu0 %740, %v635
  %v742 = vpop.permute.xlu0 %741
  %745 = vset.pattern.permute.xlu0 0
  %746 = vperm.xlu0 %745, %v636
  %v747 = vpop.permute.xlu0 %746
  %750 = vset.pattern.permute.xlu0 0
  %751 = vperm.xlu0 %750, %v637
  %v752 = vpop.permute.xlu0 %751
  %755 = vset.pattern.permute.xlu0 0
  %756 = vperm.xlu0 %755, %v638
  %v757 = vpop.permute.xlu0 %756
  %760 = vset.pattern.permute.xlu0 0
  %761 = vperm.xlu0 %760, %v639
  %v762 = vpop.permute.xlu0 %761
  %765 = vset.pattern.permute.xlu0 0
  %766 = vperm.xlu0 %765, %v640
  %v767 = vpop.permute.xlu0 %766
  %770 = vset.pattern.permute.xlu0 0
  %771 = vperm.xlu0 %770, %v641
  %v772 = vpop.permute.xlu0 %771
  %775 = vset.pattern.permute.xlu0 0
  %776 = vperm.xlu0 %775, %v642
  %v777 = vpop.permute.xlu0 %776
  %780 = vset.pattern.permute.xlu0 0
  %781 = vperm.xlu0 %780, %v643
  %v782 = vpop.permute.xlu0 %781
  %785 = vset.pattern.permute.xlu0 0
  %786 = vperm.xlu0 %785, %v644
  %v787 = vpop.permute.xlu0 %786
  %790 = vset.pattern.permute.xlu0 0
  %791 = vperm.xlu0 %790, %v645
  %v792 = vpop.permute.xlu0 %791
  %795 = vset.pattern.permute.xlu0 0
  %796 = vperm.xlu0 %795, %v646
  %v797 = vpop.permute.xlu0 %796
  %800 = vset.pattern.permute.xlu0 0
  %801 = vperm.xlu0 %800, %v647
  %v802 = vpop.permute.xlu0 %801
  %805 = vset.pattern.permute.xlu0 0
  %806 = vperm.xlu0 %805, %v648
  %v807 = vpop.permute.xlu0 %806
  %810 = vset.pattern.permute.xlu0 0
  %811 = vperm.xlu0 %810, %v649
  %v812 = vpop.permute.xlu0 %811
  %815 = vset.pattern.permute.xlu0 0
  %816 = vperm.xlu0 %815, %v650
  %v817 = vpop.permute.xlu0 %816
  %820 = vset.pattern.permute.xlu0 0
  %821 = vperm.xlu0 %820, %v651
  %v822 = vpop.permute.xlu0 %821
  %825 = vset.pattern.permute.xlu0 0
  %826 = vperm.xlu0 %825, %v652
  %v827 = vpop.permute.xlu0 %826
  %830 = vset.pattern.permute.xlu0 0
  %831 = vperm.xlu0 %830, %v653
  %v832 = vpop.permute.xlu0 %831
  %835 = vset.pattern.permute.xlu0 0
  %836 = vperm.xlu0 %835, %v654
  %v837 = vpop.permute.xlu0 %836
  %840 = vset.pattern.permute.xlu0 0
  %841 = vperm.xlu0 %840, %v655
  %v842 = vpop.permute.xlu0 %841
  %845 = vset.pattern.permute.xlu0 0
  %846 = vperm.xlu0 %845, %v656
  %v847 = vpop.permute.xlu0 %846
  %850 = vset.pattern.permute.xlu0 0
  %851 = vperm.xlu0 %850, %v657
  %v852 = vpop.permute.xlu0 %851
  %855 = vset.pattern.permute.xlu0 0
  %856 = vperm.xlu0 %855, %v658
  %v857 = vpop.permute.xlu0 %856
  %860 = vset.pattern.permute.xlu0 0
  %861 = vperm.xlu0 %860, %v659
  %v862 = vpop.permute.xlu0 %861
  %865 = vset.pattern.permute.xlu0 0
  %866 = vperm.xlu0 %865, %v660
  %v867 = vpop.permute.xlu0 %866
  %870 = vset.pattern.permute.xlu0 0
  %871 = vperm.xlu0 %870, %v661
  %v872 = vpop.permute.xlu0 %871
  %875 = vset.pattern.permute.xlu0 0
  %876 = vperm.xlu0 %875, %v662
  %v877 = vpop.permute.xlu0 %876
  %880 = vset.pattern.permute.xlu0 0
  %881 = vperm.xlu0 %880, %v663
  %v882 = vpop.permute.xlu0 %881
  %885 = vset.pattern.permute.xlu0 0
  %886 = vperm.xlu0 %885, %v664
  %v887 = vpop.permute.xlu0 %886
  %890 = vset.pattern.permute.xlu0 0
  %891 = vperm.xlu0 %890, %v665
  %v892 = vpop.permute.xlu0 %891
  %895 = vset.pattern.permute.xlu0 0
  %896 = vperm.xlu0 %895, %v666
  %v897 = vpop.permute.xlu0 %896
  %900 = vset.pattern.permute.xlu0 0
  %901 = vperm.xlu0 %900, %v667
  %v902 = vpop.permute.xlu0 %901
  %905 = vset.pattern.permute.xlu0 0
  %906 = vperm.xlu0 %905, %v668
  %v907 = vpop.permute.xlu0 %906
  %910 = vset.pattern.permute.xlu0 0
  %911 = vperm.xlu0 %910, %v669
  %v912 = vpop.permute.xlu0 %911
  %915 = vset.pattern.permute.xlu0 0
  %916 = vperm.xlu0 %915, %v670
  %v917 = vpop.permute.xlu0 %916
  %920 = vset.pattern.permute.xlu0 0
  %921 = vperm.xlu0 %920, %v671
  %v922 = vpop.permute.xlu0 %921
  %925 = vset.pattern.permute.xlu0 0
  %926 = vperm.xlu0 %925, %v672
  %v927 = vpop.permute.xlu0 %926
  %930 = vset.pattern.permute.xlu0 0
  %931 = vperm.xlu0 %930, %v673
  %v932 = vpop.permute.xlu0 %931
  %935 = vset.pattern.permute.xlu0 0
  %936 = vperm.xlu0 %935, %v674
  %v937 = vpop.permute.xlu0 %936
  %v939 = vmul.f32 %v235, %v722
  %v940 = vmul.f32 %v236, %v727
  %v941 = vmul.f32 %v237, %v732
  %v942 = vmul.f32 %v238, %v737
  %v943 = vmul.f32 %v239, %v742
  %v944 = vmul.f32 %v240, %v747
  %v945 = vmul.f32 %v241, %v752
  %v946 = vmul.f32 %v242, %v757
  %v947 = vmul.f32 %v243, %v762
  %v948 = vmul.f32 %v244, %v767
  %v949 = vmul.f32 %v245, %v772
  %v950 = vmul.f32 %v246, %v777
  %v951 = vmul.f32 %v247, %v782
  %v952 = vmul.f32 %v248, %v787
  %v953 = vmul.f32 %v249, %v792
  %v954 = vmul.f32 %v250, %v797
  %v955 = vmul.f32 %v251, %v802
  %v956 = vmul.f32 %v252, %v807
  %v957 = vmul.f32 %v253, %v812
  %v958 = vmul.f32 %v254, %v817
  %v959 = vmul.f32 %v255, %v822
  %v960 = vmul.f32 %v256, %v827
  %v961 = vmul.f32 %v257, %v832
  %v962 = vmul.f32 %v258, %v837
  %v963 = vmul.f32 %v259, %v842
  %v964 = vmul.f32 %v260, %v847
  %v965 = vmul.f32 %v261, %v852
  %v966 = vmul.f32 %v262, %v857
  %v967 = vmul.f32 %v263, %v862
  %v968 = vmul.f32 %v264, %v867
  %v969 = vmul.f32 %v265, %v872
  %v970 = vmul.f32 %v266, %v877
  %v971 = vmul.f32 %v267, %v882
  %v972 = vmul.f32 %v268, %v887
  %v973 = vmul.f32 %v269, %v892
  %v974 = vmul.f32 %v270, %v897
  %v975 = vmul.f32 %v271, %v902
  %v976 = vmul.f32 %v272, %v907
  %v977 = vmul.f32 %v273, %v912
  %v978 = vmul.f32 %v274, %v917
  %v979 = vmul.f32 %v275, %v922
  %v980 = vmul.f32 %v276, %v927
  %v981 = vmul.f32 %v277, %v932
  %v982 = vmul.f32 %v278, %v937
  %v983 = vadd.f32 %v675, %v939
  %v984 = vadd.f32 %v676, %v940
  %v985 = vadd.f32 %v677, %v941
  %v986 = vadd.f32 %v678, %v942
  %v987 = vadd.f32 %v679, %v943
  %v988 = vadd.f32 %v680, %v944
  %v989 = vadd.f32 %v681, %v945
  %v990 = vadd.f32 %v682, %v946
  %v991 = vadd.f32 %v683, %v947
  %v992 = vadd.f32 %v684, %v948
  %v993 = vadd.f32 %v685, %v949
  %v994 = vadd.f32 %v686, %v950
  %v995 = vadd.f32 %v687, %v951
  %v996 = vadd.f32 %v688, %v952
  %v997 = vadd.f32 %v689, %v953
  %v998 = vadd.f32 %v690, %v954
  %v999 = vadd.f32 %v691, %v955
  %v1000 = vadd.f32 %v692, %v956
  %v1001 = vadd.f32 %v693, %v957
  %v1002 = vadd.f32 %v694, %v958
  %v1003 = vadd.f32 %v695, %v959
  %v1004 = vadd.f32 %v696, %v960
  %v1005 = vadd.f32 %v697, %v961
  %v1006 = vadd.f32 %v698, %v962
  %v1007 = vadd.f32 %v699, %v963
  %v1008 = vadd.f32 %v700, %v964
  %v1009 = vadd.f32 %v701, %v965
  %v1010 = vadd.f32 %v702, %v966
  %v1011 = vadd.f32 %v703, %v967
  %v1012 = vadd.f32 %v704, %v968
  %v1013 = vadd.f32 %v705, %v969
  %v1014 = vadd.f32 %v706, %v970
  %v1015 = vadd.f32 %v707, %v971
  %v1016 = vadd.f32 %v708, %v972
  %v1017 = vadd.f32 %v709, %v973
  %v1018 = vadd.f32 %v710, %v974
  %v1019 = vadd.f32 %v711, %v975
  %v1020 = vadd.f32 %v712, %v976
  %v1021 = vadd.f32 %v713, %v977
  %v1022 = vadd.f32 %v714, %v978
  %v1023 = vadd.f32 %v715, %v979
  %v1024 = vadd.f32 %v716, %v980
  %v1025 = vadd.f32 %v717, %v981
  %v1026 = vadd.f32 %v718, %v982
  %1028 = vset.pattern.permute.xlu0 1
  %1029 = vperm.xlu0 %1028, %v499
  %v1030 = vpop.permute.xlu0 %1029
  %1033 = vset.pattern.permute.xlu0 1
  %1034 = vperm.xlu0 %1033, %v500
  %v1035 = vpop.permute.xlu0 %1034
  %1038 = vset.pattern.permute.xlu0 1
  %1039 = vperm.xlu0 %1038, %v501
  %v1040 = vpop.permute.xlu0 %1039
  %1043 = vset.pattern.permute.xlu0 1
  %1044 = vperm.xlu0 %1043, %v502
  %v1045 = vpop.permute.xlu0 %1044
  %1048 = vset.pattern.permute.xlu0 1
  %1049 = vperm.xlu0 %1048, %v503
  %v1050 = vpop.permute.xlu0 %1049
  %1053 = vset.pattern.permute.xlu0 1
  %1054 = vperm.xlu0 %1053, %v504
  %v1055 = vpop.permute.xlu0 %1054
  %1058 = vset.pattern.permute.xlu0 1
  %1059 = vperm.xlu0 %1058, %v505
  %v1060 = vpop.permute.xlu0 %1059
  %1063 = vset.pattern.permute.xlu0 1
  %1064 = vperm.xlu0 %1063, %v506
  %v1065 = vpop.permute.xlu0 %1064
  %1068 = vset.pattern.permute.xlu0 1
  %1069 = vperm.xlu0 %1068, %v507
  %v1070 = vpop.permute.xlu0 %1069
  %1073 = vset.pattern.permute.xlu0 1
  %1074 = vperm.xlu0 %1073, %v508
  %v1075 = vpop.permute.xlu0 %1074
  %1078 = vset.pattern.permute.xlu0 1
  %1079 = vperm.xlu0 %1078, %v509
  %v1080 = vpop.permute.xlu0 %1079
  %1083 = vset.pattern.permute.xlu0 1
  %1084 = vperm.xlu0 %1083, %v510
  %v1085 = vpop.permute.xlu0 %1084
  %1088 = vset.pattern.permute.xlu0 1
  %1089 = vperm.xlu0 %1088, %v511
  %v1090 = vpop.permute.xlu0 %1089
  %1093 = vset.pattern.permute.xlu0 1
  %1094 = vperm.xlu0 %1093, %v512
  %v1095 = vpop.permute.xlu0 %1094
  %1098 = vset.pattern.permute.xlu0 1
  %1099 = vperm.xlu0 %1098, %v513
  %v1100 = vpop.permute.xlu0 %1099
  %1103 = vset.pattern.permute.xlu0 1
  %1104 = vperm.xlu0 %1103, %v514
  %v1105 = vpop.permute.xlu0 %1104
  %1108 = vset.pattern.permute.xlu0 1
  %1109 = vperm.xlu0 %1108, %v515
  %v1110 = vpop.permute.xlu0 %1109
  %1113 = vset.pattern.permute.xlu0 1
  %1114 = vperm.xlu0 %1113, %v516
  %v1115 = vpop.permute.xlu0 %1114
  %1118 = vset.pattern.permute.xlu0 1
  %1119 = vperm.xlu0 %1118, %v517
  %v1120 = vpop.permute.xlu0 %1119
  %1123 = vset.pattern.permute.xlu0 1
  %1124 = vperm.xlu0 %1123, %v518
  %v1125 = vpop.permute.xlu0 %1124
  %1128 = vset.pattern.permute.xlu0 1
  %1129 = vperm.xlu0 %1128, %v519
  %v1130 = vpop.permute.xlu0 %1129
  %1133 = vset.pattern.permute.xlu0 1
  %1134 = vperm.xlu0 %1133, %v520
  %v1135 = vpop.permute.xlu0 %1134
  %1138 = vset.pattern.permute.xlu0 1
  %1139 = vperm.xlu0 %1138, %v521
  %v1140 = vpop.permute.xlu0 %1139
  %1143 = vset.pattern.permute.xlu0 1
  %1144 = vperm.xlu0 %1143, %v522
  %v1145 = vpop.permute.xlu0 %1144
  %1148 = vset.pattern.permute.xlu0 1
  %1149 = vperm.xlu0 %1148, %v523
  %v1150 = vpop.permute.xlu0 %1149
  %1153 = vset.pattern.permute.xlu0 1
  %1154 = vperm.xlu0 %1153, %v524
  %v1155 = vpop.permute.xlu0 %1154
  %1158 = vset.pattern.permute.xlu0 1
  %1159 = vperm.xlu0 %1158, %v525
  %v1160 = vpop.permute.xlu0 %1159
  %1163 = vset.pattern.permute.xlu0 1
  %1164 = vperm.xlu0 %1163, %v526
  %v1165 = vpop.permute.xlu0 %1164
  %1168 = vset.pattern.permute.xlu0 1
  %1169 = vperm.xlu0 %1168, %v527
  %v1170 = vpop.permute.xlu0 %1169
  %1173 = vset.pattern.permute.xlu0 1
  %1174 = vperm.xlu0 %1173, %v528
  %v1175 = vpop.permute.xlu0 %1174
  %1178 = vset.pattern.permute.xlu0 1
  %1179 = vperm.xlu0 %1178, %v529
  %v1180 = vpop.permute.xlu0 %1179
  %1183 = vset.pattern.permute.xlu0 1
  %1184 = vperm.xlu0 %1183, %v530
  %v1185 = vpop.permute.xlu0 %1184
  %1188 = vset.pattern.permute.xlu0 1
  %1189 = vperm.xlu0 %1188, %v531
  %v1190 = vpop.permute.xlu0 %1189
  %1193 = vset.pattern.permute.xlu0 1
  %1194 = vperm.xlu0 %1193, %v532
  %v1195 = vpop.permute.xlu0 %1194
  %1198 = vset.pattern.permute.xlu0 1
  %1199 = vperm.xlu0 %1198, %v533
  %v1200 = vpop.permute.xlu0 %1199
  %1203 = vset.pattern.permute.xlu0 1
  %1204 = vperm.xlu0 %1203, %v534
  %v1205 = vpop.permute.xlu0 %1204
  %1208 = vset.pattern.permute.xlu0 1
  %1209 = vperm.xlu0 %1208, %v535
  %v1210 = vpop.permute.xlu0 %1209
  %1213 = vset.pattern.permute.xlu0 1
  %1214 = vperm.xlu0 %1213, %v536
  %v1215 = vpop.permute.xlu0 %1214
  %1218 = vset.pattern.permute.xlu0 1
  %1219 = vperm.xlu0 %1218, %v537
  %v1220 = vpop.permute.xlu0 %1219
  %1223 = vset.pattern.permute.xlu0 1
  %1224 = vperm.xlu0 %1223, %v538
  %v1225 = vpop.permute.xlu0 %1224
  %1228 = vset.pattern.permute.xlu0 1
  %1229 = vperm.xlu0 %1228, %v539
  %v1230 = vpop.permute.xlu0 %1229
  %1233 = vset.pattern.permute.xlu0 1
  %1234 = vperm.xlu0 %1233, %v540
  %v1235 = vpop.permute.xlu0 %1234
  %1238 = vset.pattern.permute.xlu0 1
  %1239 = vperm.xlu0 %1238, %v541
  %v1240 = vpop.permute.xlu0 %1239
  %1243 = vset.pattern.permute.xlu0 1
  %1244 = vperm.xlu0 %1243, %v542
  %v1245 = vpop.permute.xlu0 %1244
  %v1247 = vadd.f32 %v983, %v1030
  %v1248 = vadd.f32 %v984, %v1035
  %v1249 = vadd.f32 %v985, %v1040
  %v1250 = vadd.f32 %v986, %v1045
  %v1251 = vadd.f32 %v987, %v1050
  %v1252 = vadd.f32 %v988, %v1055
  %v1253 = vadd.f32 %v989, %v1060
  %v1254 = vadd.f32 %v990, %v1065
  %v1255 = vadd.f32 %v991, %v1070
  %v1256 = vadd.f32 %v992, %v1075
  %v1257 = vadd.f32 %v993, %v1080
  %v1258 = vadd.f32 %v994, %v1085
  %v1259 = vadd.f32 %v995, %v1090
  %v1260 = vadd.f32 %v996, %v1095
  %v1261 = vadd.f32 %v997, %v1100
  %v1262 = vadd.f32 %v998, %v1105
  %v1263 = vadd.f32 %v999, %v1110
  %v1264 = vadd.f32 %v1000, %v1115
  %v1265 = vadd.f32 %v1001, %v1120
  %v1266 = vadd.f32 %v1002, %v1125
  %v1267 = vadd.f32 %v1003, %v1130
  %v1268 = vadd.f32 %v1004, %v1135
  %v1269 = vadd.f32 %v1005, %v1140
  %v1270 = vadd.f32 %v1006, %v1145
  %v1271 = vadd.f32 %v1007, %v1150
  %v1272 = vadd.f32 %v1008, %v1155
  %v1273 = vadd.f32 %v1009, %v1160
  %v1274 = vadd.f32 %v1010, %v1165
  %v1275 = vadd.f32 %v1011, %v1170
  %v1276 = vadd.f32 %v1012, %v1175
  %v1277 = vadd.f32 %v1013, %v1180
  %v1278 = vadd.f32 %v1014, %v1185
  %v1279 = vadd.f32 %v1015, %v1190
  %v1280 = vadd.f32 %v1016, %v1195
  %v1281 = vadd.f32 %v1017, %v1200
  %v1282 = vadd.f32 %v1018, %v1205
  %v1283 = vadd.f32 %v1019, %v1210
  %v1284 = vadd.f32 %v1020, %v1215
  %v1285 = vadd.f32 %v1021, %v1220
  %v1286 = vadd.f32 %v1022, %v1225
  %v1287 = vadd.f32 %v1023, %v1230
  %v1288 = vadd.f32 %v1024, %v1235
  %v1289 = vadd.f32 %v1025, %v1240
  %v1290 = vadd.f32 %v1026, %v1245
  %1291 = vst.msk [vmem:[%s3] sm:$0xff] %vm58, %v1247
  %1292 = vst.msk [vmem:[%s3 + $0x8] sm:$0xff] %vm58, %v1248
  %1293 = vst.msk [vmem:[%s3 + $0x10] sm:$0xff] %vm58, %v1249
  %1294 = vst.msk [vmem:[%s3 + $0x18] sm:$0xff] %vm58, %v1250
  %1295 = vst.msk [vmem:[%s3 + $0x20] sm:$0xff] %vm58, %v1251
  %1296 = vst.msk [vmem:[%s3 + $0x28] sm:$0xff] %vm58, %v1252
  %1297 = vst.msk [vmem:[%s3 + $0x30] sm:$0xff] %vm58, %v1253
  %1298 = vst.msk [vmem:[%s3 + $0x38] sm:$0xff] %vm58, %v1254
  %1299 = vst.msk [vmem:[%s3 + $0x40] sm:$0xff] %vm58, %v1255
  %1300 = vst.msk [vmem:[%s3 + $0x48] sm:$0xff] %vm58, %v1256
  %1301 = vst.msk [vmem:[%s3 + $0x50] sm:$0xff] %vm58, %v1257
  %1302 = vst.msk [vmem:[%s3 + $0x58] sm:$0xff] %vm58, %v1258
  %1303 = vst.msk [vmem:[%s3 + $0x60] sm:$0xff] %vm58, %v1259
  %1304 = vst.msk [vmem:[%s3 + $0x68] sm:$0xff] %vm58, %v1260
  %1305 = vst.msk [vmem:[%s3 + $0x70] sm:$0xff] %vm58, %v1261
  %1306 = vst.msk [vmem:[%s3 + $0x78] sm:$0xff] %vm58, %v1262
  %1307 = vst.msk [vmem:[%s3 + $0x80] sm:$0xff] %vm58, %v1263
  %1308 = vst.msk [vmem:[%s3 + $0x88] sm:$0xff] %vm58, %v1264
  %1309 = vst.msk [vmem:[%s3 + $0x90] sm:$0xff] %vm58, %v1265
  %1310 = vst.msk [vmem:[%s3 + $0x98] sm:$0xff] %vm58, %v1266
  %1311 = vst.msk [vmem:[%s3 + $0xa0] sm:$0xff] %vm58, %v1267
  %1312 = vst.msk [vmem:[%s3 + $0xa8] sm:$0xff] %vm58, %v1268
  %1313 = vst.msk [vmem:[%s3 + $0xb0] sm:$0xff] %vm58, %v1269
  %1314 = vst.msk [vmem:[%s3 + $0xb8] sm:$0xff] %vm58, %v1270
  %1315 = vst.msk [vmem:[%s3 + $0xc0] sm:$0xff] %vm58, %v1271
  %1316 = vst.msk [vmem:[%s3 + $0xc8] sm:$0xff] %vm58, %v1272
  %1317 = vst.msk [vmem:[%s3 + $0xd0] sm:$0xff] %vm58, %v1273
  %1318 = vst.msk [vmem:[%s3 + $0xd8] sm:$0xff] %vm58, %v1274
  %1319 = vst.msk [vmem:[%s3 + $0xe0] sm:$0xff] %vm58, %v1275
  %1320 = vst.msk [vmem:[%s3 + $0xe8] sm:$0xff] %vm58, %v1276
  %1321 = vst.msk [vmem:[%s3 + $0xf0] sm:$0xff] %vm58, %v1277
  %1322 = vst.msk [vmem:[%s3 + $0xf8] sm:$0xff] %vm58, %v1278
  %1323 = vst.msk [vmem:[%s3 + $0x100] sm:$0xff] %vm58, %v1279
  %1324 = vst.msk [vmem:[%s3 + $0x108] sm:$0xff] %vm58, %v1280
  %1325 = vst.msk [vmem:[%s3 + $0x110] sm:$0xff] %vm58, %v1281
  %1326 = vst.msk [vmem:[%s3 + $0x118] sm:$0xff] %vm58, %v1282
  %1327 = vst.msk [vmem:[%s3 + $0x120] sm:$0xff] %vm58, %v1283
  %1328 = vst.msk [vmem:[%s3 + $0x128] sm:$0xff] %vm58, %v1284
  %1329 = vst.msk [vmem:[%s3 + $0x130] sm:$0xff] %vm58, %v1285
  %1330 = vst.msk [vmem:[%s3 + $0x138] sm:$0xff] %vm58, %v1286
  %1331 = vst.msk [vmem:[%s3 + $0x140] sm:$0xff] %vm58, %v1287
  %1332 = vst.msk [vmem:[%s3 + $0x148] sm:$0xff] %vm58, %v1288
  %1333 = vst.msk [vmem:[%s3 + $0x150] sm:$0xff] %vm58, %v1289
  %1334 = vst.msk [vmem:[%s3 + $0x158] sm:$0xff] %vm58, %v1290
  // Predicated region
  $region14: #{tpu_custom_call.1} parent=0 // pred_check
    _
  $region15: #{tpu_custom_call.1} parent=0 // pred_check_branch
    %1336 = sbr.rel (0) target = $region17
  $region16: #{tpu_custom_call.1} parent=0 // pred_region
    _
  $region17: #{tpu_custom_call.1} parent=0 // pred_fallthru
    _
  // Predicated region
  $region18: #{tpu_custom_call.1} parent=0 // pred_check
    _
  $region19: #{tpu_custom_call.1} parent=0 // pred_check_branch
    %1338 = sbr.rel (0) target = $region21
  $region20: #{tpu_custom_call.1} parent=0 // pred_region
    _
  $region21: #{tpu_custom_call.1} parent=0 // pred_fallthru
    _

</llo_original>
